<compile_context>
chip_gen: v6e
topology: v6e:2x2x1
jax: 0.10.0
libtpu: 0.0.40
codegen_flags: <defaults>
</compile_context>

<pallas_src>
import functools
import math

import jax
import jax.numpy as jnp
from jax.experimental import pallas as pl
from jax.experimental.pallas import tpu as pltpu


def _round_up(a, b):
    return ((a + b - 1) // b) * b


def _cdiv(a, b):
    return (a + b - 1) // b


def _gelu_tanh(x):
    # GELU with tanh approximation (matches torch.nn.GELU(approximate='tanh')).
    c = math.sqrt(2.0 / math.pi)
    return 0.5 * x * (1.0 + jnp.tanh(c * (x + 0.044715 * x * x * x)))


def _choose_tk_h(H, target):
    """Largest divisor of H that is a multiple of 128 and <= target (MXU-friendly)."""
    best = 0
    d = 128
    while d <= min(target, H):
        if H % d == 0:
            best = d
        d += 128
    return best if best else H  # tiny / odd H: single reduction step over full H


def _mlp_kernel(x_ref, w1_ref, b1_ref, w2_ref, b2_ref, o_ref, *, tk_h, resident):
    """Grid: (i over token tiles [parallel], k over hidden blocks [arbitrary]).

    x_ref : (TM, C)            f32  token tile (cast to bf16 in-kernel)
    w1_ref: (C, H)/(C, TKH)    bf16 c_fc weight (resident / streamed panel)
    b1_ref: (1, H)/(1, TKH)    f32  c_fc bias
    w2_ref: (H, C)/(TKH, C)    bf16 c_proj weight (resident / streamed panel)
    b2_ref: (1, C)             f32  c_proj bias
    o_ref : (TM, C)            f32  output tile, resident across k (accumulator)
    """
    k = pl.program_id(1)
    nk = pl.num_programs(1)

    @pl.when(k == 0)
    def _():
        o_ref[...] = jnp.zeros_like(o_ref)

    if resident:
        off = pl.multiple_of(k * tk_h, tk_h)
        w1_blk = w1_ref[:, pl.ds(off, tk_h)]
        b1_blk = b1_ref[:, pl.ds(off, tk_h)]
        w2_blk = w2_ref[pl.ds(off, tk_h), :]
    else:
        w1_blk = w1_ref[...]
        b1_blk = b1_ref[...]
        w2_blk = w2_ref[...]

    # c_fc partial: bf16 MXU matmul with f32 accumulation; bias + GELU in f32.
    xb = x_ref[...].astype(jnp.bfloat16)
    h = jnp.dot(xb, w1_blk, preferred_element_type=jnp.float32)
    h = _gelu_tanh(h + b1_blk)

    # c_proj partial: accumulate straight into the resident f32 output block.
    o_ref[...] += jnp.dot(h.astype(jnp.bfloat16), w2_blk,
                          preferred_element_type=jnp.float32)

    @pl.when(k == nk - 1)
    def _():
        o_ref[...] += b2_ref[...]


def prepare_mlp_params(w_fc, b_fc, w_proj, b_proj):
    """One-time weight prep (transpose to (in,out) layout + bf16 cast), hoisted out
    of the per-call forward so per-forward weight traffic is only the kernel DMA."""
    H, C = w_fc.shape
    return {
        "w1": w_fc.T.astype(jnp.bfloat16),              # (C, H)
        "b1": b_fc.reshape(1, H).astype(jnp.float32),   # (1, H)
        "w2": w_proj.T.astype(jnp.bfloat16),            # (H, C)
        "b2": b_proj.reshape(1, C).astype(jnp.float32),  # (1, C)
    }


# Conservative budget so the resident-weight path also fits v7x (64 MiB / TC),
# leaving headroom for the pipelined x / out tiles.
_RESIDENT_VMEM_BUDGET = 40 * 1024 * 1024


def mlp_forward(x, params, *, tile_m=512, tk_h=512):
    """x: (B, T, C) float32; params from prepare_mlp_params."""
    B, T, C = x.shape
    H = params["w1"].shape[1]
    M = B * T

    # --- tile selection ------------------------------------------------------
    tk_h = _choose_tk_h(H, min(tk_h, H))
    n_k = H // tk_h

    tile_m = min(tile_m, _round_up(M, 8))
    # v7x has two TensorCores: keep >= 2 token tiles so the "parallel" axis splits.
    if M > 8 and _round_up(M, tile_m) // tile_m < 2:
        tile_m = _round_up(_cdiv(M, 2), 8)
    M_pad = _round_up(M, tile_m)
    n_i = M_pad // tile_m

    # --- resident vs streamed weights ----------------------------------------
    weight_bytes = 2 * 2 * C * H                  # W1 + W2 in bf16
    tile_bytes = 2 * 2 * tile_m * C * 4           # x + out tiles, double buffered
    h_bytes = tile_m * tk_h * 4                   # GELU intermediate
    # Resident weights still get the default 2 pipeline buffers; budget for it.
    resident = 2 * weight_bytes + tile_bytes + h_bytes <= _RESIDENT_VMEM_BUDGET
    # TODO(synk): pipeline_mode=pl.Buffered(1) on the weight specs would halve the
    # resident-weight footprint; kept on default buffering for broad JAX compat.

    if resident:
        w_specs = [
            pl.BlockSpec((C, H), lambda i, k: (0, 0)),       # W1, DMA'd once
            pl.BlockSpec((1, H), lambda i, k: (0, 0)),       # b1, DMA'd once
            pl.BlockSpec((H, C), lambda i, k: (0, 0)),       # W2, DMA'd once
        ]
        vmem_est = 2 * weight_bytes + tile_bytes + h_bytes
        weight_hbm_bytes = weight_bytes                      # single pass
    else:
        # Large models: stream (C, tk_h)/(tk_h, C) panels; big tile_m amortizes them.
        w_specs = [
            pl.BlockSpec((C, tk_h), lambda i, k: (0, k)),
            pl.BlockSpec((1, tk_h), lambda i, k: (0, k)),
            pl.BlockSpec((tk_h, C), lambda i, k: (k, 0)),
        ]
        vmem_est = 2 * 2 * 2 * C * tk_h + tile_bytes + h_bytes
        weight_hbm_bytes = weight_bytes * n_i                # re-read per token tile

    x2d = x.reshape(M, C)
    if M_pad != M:
        x2d = jnp.pad(x2d, ((0, M_pad - M), (0, 0)))

    cost = pl.CostEstimate(
        flops=4 * M_pad * C * H,                   # two matmuls, 2*M*C*H flops each
        transcendentals=M_pad * H,                 # tanh in the GELU
        bytes_accessed=int(M_pad * C * 4 * 2 + weight_hbm_bytes + (H + C) * 4),
    )

    compiler_params = pltpu.CompilerParams(
        dimension_semantics=("parallel", "arbitrary"),
        vmem_limit_bytes=int(min(max(vmem_est * 5 // 4 + 4 * 2**20, 32 * 2**20),
                                 100 * 2**20)),
    )

    out2d = pl.pallas_call(
        functools.partial(_mlp_kernel, tk_h=tk_h, resident=resident),
        out_shape=jax.ShapeDtypeStruct((M_pad, C), jnp.float32),
        grid_spec=pltpu.PrefetchScalarGridSpec(
            num_scalar_prefetch=0,
            grid=(n_i, n_k),
            in_specs=[pl.BlockSpec((tile_m, C), lambda i, k: (i, 0))]   # x tile (f32)
                     + w_specs
                     + [pl.BlockSpec((1, C), lambda i, k: (0, 0))],     # b2
            out_specs=pl.BlockSpec((tile_m, C), lambda i, k: (i, 0)),
        ),
        compiler_params=compiler_params,
        cost_estimate=cost,
    )(x2d, params["w1"], params["b1"], params["w2"], params["b2"])

    if M_pad != M:
        out2d = out2d[:M]
    return out2d.reshape(B, T, C).astype(x.dtype)


def mlp_reference(x, w_fc, b_fc, w_proj, b_proj):
    # Pure f32 reference matching the PyTorch module (torch Linear layout: (out, in)).
    h = jnp.einsum("btc,hc->bth", x, w_fc) + b_fc
    h = _gelu_tanh(h)
    return jnp.einsum("bth,ch->btc", h, w_proj) + b_proj


if __name__ == "__main__":
    # Small config consistent with the module: n_embd=32 -> hidden=128.
    B, T, C = 2, 8, 32
    H = 4 * C

    key = jax.random.PRNGKey(0)
    kx, kw1, kb1, kw2, kb2 = jax.random.split(key, 5)

    x = jax.random.normal(kx, (B, T, C), dtype=jnp.float32)

    std_fc = 1.0 / math.sqrt(C)
    std_proj = 1.0 / math.sqrt(H)
    w_fc = jax.random.normal(kw1, (H, C), dtype=jnp.float32) * std_fc
    b_fc = jax.random.normal(kb1, (H,), dtype=jnp.float32) * std_fc
    w_proj = jax.random.normal(kw2, (C, H), dtype=jnp.float32) * std_proj
    b_proj = jax.random.normal(kb2, (C,), dtype=jnp.float32) * std_proj

    params = prepare_mlp_params(w_fc, b_fc, w_proj, b_proj)   # one-time weight prep
    out = mlp_forward(x, params)
    out = jax.block_until_ready(out)

    ref = mlp_reference(x, w_fc, b_fc, w_proj, b_proj)
    assert out.shape == (B, T, C)
    # bf16 MXU operands with f32 accumulation -> allow ~1e-2 deviation vs f32 ref.
    assert jnp.allclose(out, ref, atol=2e-2, rtol=2e-2), "mismatch vs reference"

    print("KERNEL_OK")
</pallas_src>

<mosaic_0001>
module attributes {stable_mosaic.version = 11 : i64} {
  func.func @_mlp_kernel(%arg0: i32, %arg1: i32, %arg2: memref<8x32xf32, #tpu.memory_space<vmem>>, %arg3: memref<32x128xbf16, #tpu.memory_space<vmem>>, %arg4: memref<1x128xf32, #tpu.memory_space<vmem>>, %arg5: memref<128x32xbf16, #tpu.memory_space<vmem>>, %arg6: memref<1x32xf32, #tpu.memory_space<vmem>>, %arg7: memref<8x32xf32, #tpu.memory_space<vmem>>) attributes {dimension_semantics = [#tpu.dimension_semantics<parallel>, #tpu.dimension_semantics<arbitrary>], iteration_bounds = array<i64: 2, 1>, scalar_prefetch = 0 : i64, scratch_operands = 0 : i64, tpu.core_type = #tpu.core_type<tc>, window_params = [{transform_indices = @transform_0, window_bounds = array<i64: 8, 32>}, {pipeline_mode = #tpu.pipeline_mode<synchronous>, transform_indices = @transform_1, window_bounds = array<i64: 32, 128>}, {pipeline_mode = #tpu.pipeline_mode<synchronous>, transform_indices = @transform_2, window_bounds = array<i64: 1, 128>}, {pipeline_mode = #tpu.pipeline_mode<synchronous>, transform_indices = @transform_3, window_bounds = array<i64: 128, 32>}, {pipeline_mode = #tpu.pipeline_mode<synchronous>, transform_indices = @transform_4, window_bounds = array<i64: 1, 32>}, {transform_indices = @transform_5, window_bounds = array<i64: 8, 32>}]} {
    %c0_i32 = arith.constant 0 : i32
    %0 = arith.cmpi eq, %arg1, %c0_i32 : i32
    %1 = arith.extui %0 : i1 to i32
    %c0_i32_0 = arith.constant 0 : i32
    %2 = arith.cmpi ne, %1, %c0_i32_0 : i32
    scf.if %2 {
      %cst_16 = arith.constant 0.000000e+00 : f32
      %37 = vector.broadcast %cst_16 : f32 to vector<8x32xf32>
      %c0_17 = arith.constant 0 : index
      %c0_18 = arith.constant 0 : index
      %38 = vector.load %arg7[%c0_17, %c0_18] : memref<8x32xf32, #tpu.memory_space<vmem>>, vector<8x32xf32>
      tpu.vector_store %arg7[%c0_17, %c0_18], %37 {strides = array<i32>} : memref<8x32xf32, #tpu.memory_space<vmem>>, vector<8x32xf32>,
    } else {
    }
    %c128_i32 = arith.constant 128 : i32
    %3 = arith.muli %arg1, %c128_i32 : i32
    %4 = tpu.assume_multiple %3, 128 : i32
    %c0 = arith.constant 0 : index
    %5 = arith.index_cast %4 : i32 to index
    %6 = vector.load %arg3[%c0, %5] : memref<32x128xbf16, #tpu.memory_space<vmem>>, vector<32x128xbf16>
    %c0_1 = arith.constant 0 : index
    %7 = arith.index_cast %4 : i32 to index
    %8 = vector.load %arg4[%c0_1, %7] : memref<1x128xf32, #tpu.memory_space<vmem>>, vector<1x128xf32>
    %9 = arith.index_cast %4 : i32 to index
    %c0_2 = arith.constant 0 : index
    %10 = vector.load %arg5[%9, %c0_2] : memref<128x32xbf16, #tpu.memory_space<vmem>>, vector<128x32xbf16>
    %c0_3 = arith.constant 0 : index
    %c0_4 = arith.constant 0 : index
    %11 = vector.load %arg2[%c0_3, %c0_4] : memref<8x32xf32, #tpu.memory_space<vmem>>, vector<8x32xf32>
    %12 = arith.truncf %11 : vector<8x32xf32> to vector<8x32xbf16>
    %cst = arith.constant dense<0.000000e+00> : vector<8x128xf32>
    %13 = tpu.matmul %12, %6, %cst {dimension_numbers = #tpu.dot_dimension_numbers<[1], [0], [0], [1], [0, 0, 1, 1], [], []>} : vector<8x32xbf16>, vector<32x128xbf16>, vector<8x128xf32> -> vector<8x128xf32>
    %14 = vector.broadcast %8 : vector<1x128xf32> to vector<8x128xf32>
    %15 = arith.addf %13, %14 : vector<8x128xf32>
    %cst_5 = arith.constant 5.000000e-01 : f32
    %16 = vector.broadcast %cst_5 : f32 to vector<8x128xf32>
    %17 = arith.mulf %16, %15 : vector<8x128xf32>
    %cst_6 = arith.constant 4.471500e-02 : f32
    %18 = vector.broadcast %cst_6 : f32 to vector<8x128xf32>
    %19 = arith.mulf %18, %15 : vector<8x128xf32>
    %20 = arith.mulf %19, %15 : vector<8x128xf32>
    %21 = arith.mulf %20, %15 : vector<8x128xf32>
    %22 = arith.addf %15, %21 : vector<8x128xf32>
    %cst_7 = arith.constant 0.797884583 : f32
    %23 = vector.broadcast %cst_7 : f32 to vector<8x128xf32>
    %24 = arith.mulf %23, %22 : vector<8x128xf32>
    %25 = math.tanh %24 : vector<8x128xf32>
    %cst_8 = arith.constant 1.000000e+00 : f32
    %26 = vector.broadcast %cst_8 : f32 to vector<8x128xf32>
    %27 = arith.addf %26, %25 : vector<8x128xf32>
    %28 = arith.mulf %17, %27 : vector<8x128xf32>
    %c0_9 = arith.constant 0 : index
    %c0_10 = arith.constant 0 : index
    %29 = vector.load %arg7[%c0_9, %c0_10] : memref<8x32xf32, #tpu.memory_space<vmem>>, vector<8x32xf32>
    %30 = arith.truncf %28 : vector<8x128xf32> to vector<8x128xbf16>
    %cst_11 = arith.constant dense<0.000000e+00> : vector<8x32xf32>
    %31 = tpu.matmul %30, %10, %cst_11 {dimension_numbers = #tpu.dot_dimension_numbers<[1], [0], [0], [1], [0, 0, 1, 1], [], []>} : vector<8x128xbf16>, vector<128x32xbf16>, vector<8x32xf32> -> vector<8x32xf32>
    %32 = arith.addf %29, %31 : vector<8x32xf32>
    %c0_12 = arith.constant 0 : index
    %c0_13 = arith.constant 0 : index
    %33 = vector.load %arg7[%c0_12, %c0_13] : memref<8x32xf32, #tpu.memory_space<vmem>>, vector<8x32xf32>
    tpu.vector_store %arg7[%c0_12, %c0_13], %32 {strides = array<i32>} : memref<8x32xf32, #tpu.memory_space<vmem>>, vector<8x32xf32>,
    %c0_i32_14 = arith.constant 0 : i32
    %34 = arith.cmpi eq, %arg1, %c0_i32_14 : i32
    %35 = arith.extui %34 : i1 to i32
    %c0_i32_15 = arith.constant 0 : i32
    %36 = arith.cmpi ne, %35, %c0_i32_15 : i32
    scf.if %36 {
      %c0_16 = arith.constant 0 : index
      %c0_17 = arith.constant 0 : index
      %37 = vector.load %arg7[%c0_16, %c0_17] : memref<8x32xf32, #tpu.memory_space<vmem>>, vector<8x32xf32>
      %c0_18 = arith.constant 0 : index
      %c0_19 = arith.constant 0 : index
      %38 = vector.load %arg6[%c0_18, %c0_19] : memref<1x32xf32, #tpu.memory_space<vmem>>, vector<1x32xf32>
      %39 = vector.broadcast %38 : vector<1x32xf32> to vector<8x32xf32>
      %40 = arith.addf %37, %39 : vector<8x32xf32>
      %c0_20 = arith.constant 0 : index
      %c0_21 = arith.constant 0 : index
      %41 = vector.load %arg7[%c0_20, %c0_21] : memref<8x32xf32, #tpu.memory_space<vmem>>, vector<8x32xf32>
      tpu.vector_store %arg7[%c0_20, %c0_21], %40 {strides = array<i32>} : memref<8x32xf32, #tpu.memory_space<vmem>>, vector<8x32xf32>,
    } else {
    }
    return
  }
  func.func @transform_0(%arg0: i32, %arg1: i32) -> (i32, i32) {
    %c0_i32 = arith.constant 0 : i32
    %c0_i32_0 = arith.constant 0 : i32
    return %arg0, %c0_i32 : i32, i32
  }
  func.func @transform_1(%arg0: i32, %arg1: i32) -> (i32, i32) {
    %c0_i32 = arith.constant 0 : i32
    %c0_i32_0 = arith.constant 0 : i32
    %c0_i32_1 = arith.constant 0 : i32
    return %c0_i32, %c0_i32_0 : i32, i32
  }
  func.func @transform_2(%arg0: i32, %arg1: i32) -> (i32, i32) {
    %c0_i32 = arith.constant 0 : i32
    %c0_i32_0 = arith.constant 0 : i32
    %c0_i32_1 = arith.constant 0 : i32
    return %c0_i32, %c0_i32_0 : i32, i32
  }
  func.func @transform_3(%arg0: i32, %arg1: i32) -> (i32, i32) {
    %c0_i32 = arith.constant 0 : i32
    %c0_i32_0 = arith.constant 0 : i32
    %c0_i32_1 = arith.constant 0 : i32
    return %c0_i32, %c0_i32_0 : i32, i32
  }
  func.func @transform_4(%arg0: i32, %arg1: i32) -> (i32, i32) {
    %c0_i32 = arith.constant 0 : i32
    %c0_i32_0 = arith.constant 0 : i32
    %c0_i32_1 = arith.constant 0 : i32
    return %c0_i32, %c0_i32_0 : i32, i32
  }
  func.func @transform_5(%arg0: i32, %arg1: i32) -> (i32, i32) {
    %c0_i32 = arith.constant 0 : i32
    %c0_i32_0 = arith.constant 0 : i32
    return %arg0, %c0_i32 : i32, i32
  }
}

</mosaic_0001>

<llo_original>
// kernel: tpu_custom_call.1
$region0: #{tpu_custom_call.1}
  #allocation0 [shape = 'u32[]', space=smem, size = 0x4, offset = 0x4, fixed_abs, tag = 'smem constant byte address 0x4 - core index']
  #allocation1 [shape = 'u32[144,128]{1,0:T(1,128)}', space=vmem, size = 0x12000, scoped, tag = 'internal scratch']
  %s0 = inlined_call_operand.vmem [shape: f32[16,32], index: 0, kind: input, shape index: {}]
  %s1 = inlined_call_operand.vmem [shape: bf16[32,128], index: 1, kind: input, shape index: {}]
  %s2 = inlined_call_operand.vmem [shape: f32[1,128], index: 2, kind: input, shape index: {}]
  %s3 = inlined_call_operand.vmem [shape: bf16[128,32], index: 3, kind: input, shape index: {}]
  %s4 = inlined_call_operand.vmem [shape: f32[1,32], index: 4, kind: input, shape index: {}]
  %s5 = inlined_call_operand.hbm [shape: f32[16,32], index: 5, kind: output, shape index: {}]
  %s6 = sld [smem:[#allocation0]]
  $region61: #{tpu_custom_call.1} parent=0
    _
  %s8 = ssub.s32 1, %s6
  %s9 = scalar_select 0, %s8, %s6
  $region1: #{tpu_custom_call.1} parent=0
    #allocation2 [shape = 'u8[8192]{0}', space=vmem, size = 0x2000, scoped, tag = 'output window, operand 0']
    #allocation3 [shape = 's32[2]{0}', space=sflag, size = 0x8, scoped, tag = 'scoped memory for tpu_custom_call.1']
    %10 = vsyncpa [#allocation3], 0
    %s11 = scalar_lea.sflag [#allocation3], 1
    %12 = vsyncpa %s11, 0
    loop: start=0, step=1, limit=4
    $region2: #{tpu_custom_call.1} parent=1 // loop_pre_header
      _
    $region3: #{tpu_custom_call.1} parent=1 // loop_header
      %s14 = sphi 0, %s18
      %p15 = scmp.ge.s32.totalorder %s14, 4
      %s21 = sphi 0, %s33
      %s22 = sphi 0, %s29
      %s23 = sphi 0, %s21
      %s24 = sphi 0, %s22
      %s25 = sphi 0, %s23
      %s26 = sphi 0, %s24
      %s36 = sphi 0, %s38
      %s39 = sphi 0, %s36
      %s40 = sphi 0, %s39
      %s56 = sphi 0, %s40
      %s60 = sphi 0, %s60
      %s62 = sphi 0, %s60
      %s63 = sphi 0, %s62
      %s77 = sphi 0, %s63
      %s81 = sphi 0, %s81
      %s83 = sphi 0, %s81
      %s84 = sphi 0, %s83
      %s98 = sphi 0, %s84
      %s102 = sphi 0, %s102
      %s104 = sphi 0, %s102
      %s105 = sphi 0, %s104
      %s119 = sphi 0, %s105
      %s123 = sphi 0, %s123
      %s125 = sphi 0, %s123
      %s126 = sphi 0, %s125
      %s140 = sphi 0, %s126
      %s146 = sphi 0, %s148
      %s149 = sphi 0, %s146
      %s150 = sphi 0, %s149
      %s166 = sphi 0, %s150
    $region4: #{tpu_custom_call.1} parent=1 // loop_header_branch
      %17 = sbr.rel (%p15) target = $region8
    $region5: #{tpu_custom_call.1} parent=1 // loop_body
      %s19 = ssub.s32 %s14, 1
      %s20 = ssub.s32 %s14, 2
      %s27 = sadd.s32 1, %s22
      %p28 = scmp.ge.s32.totalorder %s27, 1
      %s29 = scalar_select %p28, 0, %s27
      %s30 = sadd.s32 1, %s21
      %s31 = scalar_select %p28, %s30, %s21
      %p32 = scmp.ge.s32.totalorder %s31, 2
      %s33 = scalar_select %p32, 0, %s31
      %s34 = ssub.s32 %s21, %s33
      %p35 = scmp.eq.s32.totalorder %s34, 0
      %s37 = sadd.s32 %s36, 1
      %s38 = scalar_select %p35, %s36, %s37
      %p41 = pneg %p35
      %p42 = scmp.eq.s32.totalorder %s14, 1
      %p43 = por %p41, %p42
      %p44 = scmp.ne.s32.totalorder %s36, %s39
      %p45 = scmp.eq.s32.totalorder %s14, 0
      %p46 = por %p44, %p45
      %p47 = scmp.ne.s32.totalorder %s36, %s39
      %p48 = scmp.eq.s32.totalorder %s19, 1
      %p49 = por %p47, %p48
      %p50 = scmp.ne.s32.totalorder %s39, %s40
      %p51 = scmp.eq.s32.totalorder %s19, 0
      %p52 = por %p50, %p51
      %p53 = scmp.ne.s32.totalorder %s39, %s40
      %p54 = scmp.eq.s32.totalorder %s20, 1
      %p55 = por %p53, %p54
      %p57 = scmp.ne.s32.totalorder %s40, %s56
      %p58 = scmp.eq.s32.totalorder %s20, 0
      %p59 = por %p57, %p58
      %s61 = sadd.s32 %s60, 1
      %p64 = scmp.eq.s32.totalorder %s14, 1
      %p65 = scmp.ne.s32.totalorder %s60, %s62
      %p66 = scmp.eq.s32.totalorder %s14, 0
      %p67 = por %p65, %p66
      %p68 = scmp.ne.s32.totalorder %s60, %s62
      %p69 = scmp.eq.s32.totalorder %s19, 1
      %p70 = por %p68, %p69
      %p71 = scmp.ne.s32.totalorder %s62, %s63
      %p72 = scmp.eq.s32.totalorder %s19, 0
      %p73 = por %p71, %p72
      %p74 = scmp.ne.s32.totalorder %s62, %s63
      %p75 = scmp.eq.s32.totalorder %s20, 1
      %p76 = por %p74, %p75
      %p78 = scmp.ne.s32.totalorder %s63, %s77
      %p79 = scmp.eq.s32.totalorder %s20, 0
      %p80 = por %p78, %p79
      %s82 = sadd.s32 %s81, 1
      %p85 = scmp.eq.s32.totalorder %s14, 1
      %p86 = scmp.ne.s32.totalorder %s81, %s83
      %p87 = scmp.eq.s32.totalorder %s14, 0
      %p88 = por %p86, %p87
      %p89 = scmp.ne.s32.totalorder %s81, %s83
      %p90 = scmp.eq.s32.totalorder %s19, 1
      %p91 = por %p89, %p90
      %p92 = scmp.ne.s32.totalorder %s83, %s84
      %p93 = scmp.eq.s32.totalorder %s19, 0
      %p94 = por %p92, %p93
      %p95 = scmp.ne.s32.totalorder %s83, %s84
      %p96 = scmp.eq.s32.totalorder %s20, 1
      %p97 = por %p95, %p96
      %p99 = scmp.ne.s32.totalorder %s84, %s98
      %p100 = scmp.eq.s32.totalorder %s20, 0
      %p101 = por %p99, %p100
      %s103 = sadd.s32 %s102, 1
      %p106 = scmp.eq.s32.totalorder %s14, 1
      %p107 = scmp.ne.s32.totalorder %s102, %s104
      %p108 = scmp.eq.s32.totalorder %s14, 0
      %p109 = por %p107, %p108
      %p110 = scmp.ne.s32.totalorder %s102, %s104
      %p111 = scmp.eq.s32.totalorder %s19, 1
      %p112 = por %p110, %p111
      %p113 = scmp.ne.s32.totalorder %s104, %s105
      %p114 = scmp.eq.s32.totalorder %s19, 0
      %p115 = por %p113, %p114
      %p116 = scmp.ne.s32.totalorder %s104, %s105
      %p117 = scmp.eq.s32.totalorder %s20, 1
      %p118 = por %p116, %p117
      %p120 = scmp.ne.s32.totalorder %s105, %s119
      %p121 = scmp.eq.s32.totalorder %s20, 0
      %p122 = por %p120, %p121
      %s124 = sadd.s32 %s123, 1
      %p127 = scmp.eq.s32.totalorder %s14, 1
      %p128 = scmp.ne.s32.totalorder %s123, %s125
      %p129 = scmp.eq.s32.totalorder %s14, 0
      %p130 = por %p128, %p129
      %p131 = scmp.ne.s32.totalorder %s123, %s125
      %p132 = scmp.eq.s32.totalorder %s19, 1
      %p133 = por %p131, %p132
      %p134 = scmp.ne.s32.totalorder %s125, %s126
      %p135 = scmp.eq.s32.totalorder %s19, 0
      %p136 = por %p134, %p135
      %p137 = scmp.ne.s32.totalorder %s125, %s126
      %p138 = scmp.eq.s32.totalorder %s20, 1
      %p139 = por %p137, %p138
      %p141 = scmp.ne.s32.totalorder %s126, %s140
      %p142 = scmp.eq.s32.totalorder %s20, 0
      %p143 = por %p141, %p142
      %s144 = ssub.s32 %s21, %s33
      %p145 = scmp.eq.s32.totalorder %s144, 0
      %s147 = sadd.s32 %s146, 1
      %s148 = scalar_select %p145, %s146, %s147
      %p151 = pneg %p145
      %p152 = scmp.eq.s32.totalorder %s14, 1
      %p153 = por %p151, %p152
      %p154 = scmp.ne.s32.totalorder %s146, %s149
      %p155 = scmp.eq.s32.totalorder %s14, 0
      %p156 = por %p154, %p155
      %p157 = scmp.ne.s32.totalorder %s146, %s149
      %p158 = scmp.eq.s32.totalorder %s19, 1
      %p159 = por %p157, %p158
      %p160 = scmp.ne.s32.totalorder %s149, %s150
      %p161 = scmp.eq.s32.totalorder %s19, 0
      %p162 = por %p160, %p161
      %p163 = scmp.ne.s32.totalorder %s149, %s150
      %p164 = scmp.eq.s32.totalorder %s20, 1
      %p165 = por %p163, %p164
      %p167 = scmp.ne.s32.totalorder %s150, %s166
      %p168 = scmp.eq.s32.totalorder %s20, 0
      %p169 = por %p167, %p168
      %p170 = scmp.le.s32.totalorder 1, %s14
      %p171 = scmp.lt.s32.totalorder %s14, 3
      %p172 = pnand %p170, %p171
      %p173 = pneg %p172
      // Predicated region
      $region9: #{tpu_custom_call.1} parent=5 // pred_check
        _
      $region10: #{tpu_custom_call.1} parent=5 // pred_check_branch
        %175 = sbr.rel (%p172) target = $region12
      $region11: #{tpu_custom_call.1} parent=5 // pred_region
        %s176 = ssub.s32 %s14, 1
        // Predicated region
        $region13: #{tpu_custom_call.1} parent=11 // pred_check
          %p177 = pneg %p73
        $region14: #{tpu_custom_call.1} parent=11 // pred_check_branch
          %179 = sbr.rel (%p177) target = $region16
        $region15: #{tpu_custom_call.1} parent=11 // pred_region
          _
        $region16: #{tpu_custom_call.1} parent=11 // pred_fallthru
          _
        // Predicated region
        $region17: #{tpu_custom_call.1} parent=11 // pred_check
          %p180 = pneg %p94
        $region18: #{tpu_custom_call.1} parent=11 // pred_check_branch
          %182 = sbr.rel (%p180) target = $region20
        $region19: #{tpu_custom_call.1} parent=11 // pred_region
          _
        $region20: #{tpu_custom_call.1} parent=11 // pred_fallthru
          _
        // Predicated region
        $region21: #{tpu_custom_call.1} parent=11 // pred_check
          %p183 = pneg %p115
        $region22: #{tpu_custom_call.1} parent=11 // pred_check_branch
          %185 = sbr.rel (%p183) target = $region24
        $region23: #{tpu_custom_call.1} parent=11 // pred_region
          _
        $region24: #{tpu_custom_call.1} parent=11 // pred_fallthru
          _
        // Predicated region
        $region25: #{tpu_custom_call.1} parent=11 // pred_check
          %p186 = pneg %p136
        $region26: #{tpu_custom_call.1} parent=11 // pred_check_branch
          %188 = sbr.rel (%p186) target = $region28
        $region27: #{tpu_custom_call.1} parent=11 // pred_region
          _
        $region28: #{tpu_custom_call.1} parent=11 // pred_fallthru
          _
      $region12: #{tpu_custom_call.1} parent=5 // pred_fallthru
        _
      %p189 = scmp.lt.s32.totalorder %s14, 2
      // Predicated region
      $region29: #{tpu_custom_call.1} parent=5 // pred_check
        %p190 = pneg %p189
      $region30: #{tpu_custom_call.1} parent=5 // pred_check_branch
        %192 = sbr.rel (%p190) target = $region32
      $region31: #{tpu_custom_call.1} parent=5 // pred_region
        // Predicated region
        $region33: #{tpu_custom_call.1} parent=31 // pred_check
          %p193 = pneg %p46
        $region34: #{tpu_custom_call.1} parent=31 // pred_check_branch
          %195 = sbr.rel (%p193) target = $region36
        $region35: #{tpu_custom_call.1} parent=31 // pred_region
          %p196 = scmp.lt.s32.totalorder %s21, 1
          %s197 = scalar_select %p196, %s21, 1
          %s198 = smul.addr %s197, 8
          %s199 = scalar_lea.vmem %s0, %s198
        $region36: #{tpu_custom_call.1} parent=31 // pred_fallthru
          _
      $region32: #{tpu_custom_call.1} parent=5 // pred_fallthru
        _
      %p200 = scmp.le.s32.totalorder 1, %s14
      %p201 = scmp.lt.s32.totalorder %s14, 3
      %p202 = pnand %p200, %p201
      %p203 = pneg %p202
      // Predicated region
      $region37: #{tpu_custom_call.1} parent=5 // pred_check
        _
      $region38: #{tpu_custom_call.1} parent=5 // pred_check_branch
        %205 = sbr.rel (%p202) target = $region40
      $region39: #{tpu_custom_call.1} parent=5 // pred_region
        %s206 = ssub.s32 %s14, 1
        %p207 = scmp.lt.s32.totalorder %s23, 1
        %s208 = scalar_select %p207, %s23, 1
        %s209 = smul.addr %s208, 8
        %s210 = scalar_lea.vmem %s0, %s209
        %p211 = pneg %p52
        %p212 = pneg %p49
        %p213 = pneg %p73
        %p214 = pneg %p70
        %p215 = pneg %p94
        %p216 = pneg %p91
        %p217 = pneg %p115
        %p218 = pneg %p112
        %p219 = pneg %p136
        %p220 = pneg %p133
        %p221 = pneg %p162
        %p222 = pneg %p159
        %s223 = sand.u32 %s149, 1
        %s224 = scalar_lea.sflag [#allocation3], %s223
        %s225 = sand.u32 %s149, 1
        %s226 = smul.addr %s225, 8
        %s227 = scalar_lea.vmem [#allocation2], %s226
        %p228 = scmp.lt.s32.totalorder %s23, 1
        %s229 = scalar_select %p228, %s23, 1
        %s230 = smul.addr %s229, 8
        %s231 = scalar_lea.vmem %s0, %s230
        %p233 = scmp.eq.s32.totalorder %s24, 0
        // Predicated region
        $region41: #{tpu_custom_call.1} parent=39 // pred_check
          %p234 = pneg %p233
        $region42: #{tpu_custom_call.1} parent=39 // pred_check_branch
          %236 = sbr.rel (%p234) target = $region44
        $region43: #{tpu_custom_call.1} parent=39 // pred_region
          %vm237 = vcmask 261120
          %238 = vst.msk [vmem:[%s227] sm:$0xff] %vm237, 0.0
        $region44: #{tpu_custom_call.1} parent=39 // pred_fallthru
          _
        %s239 = smul.u32 %s24, 128
        %s240 = sshra.s32 %s239, 7
        %s241 = sand.u32 %s239, 127
        %s242 = smul.addr %s240, 4
        %s243 = scalar_lea.vmem %s1, %s242
        %v244 = vld [vmem:[%s243] sm:$0xf]
        %v245 = vld [vmem:[%s243 + $0x4] sm:$0xf]
        %v246 = vld [vmem:[%s243 + $0x8] sm:$0xf]
        %v247 = vld [vmem:[%s243 + $0xc] sm:$0xf]
        %s248 = scalar_lea.vmem %s2, %s240
        %v249 = vld [vmem:[%s248] sm:$0x1]
        %s250 = sshra.s32 %s239, 3
        %s251 = sand.u32 %s239, 7
        %s252 = smul.addr %s250, 4
        %s253 = scalar_lea.vmem %s3, %s252
        %v254 = vld [vmem:[%s253] sm:$0xf]
        %v255 = vld [vmem:[%s253 + $0x4] sm:$0xf]
        %v256 = vld [vmem:[%s253 + $0x8] sm:$0xf]
        %v257 = vld [vmem:[%s253 + $0xc] sm:$0xf]
        %v258 = vld [vmem:[%s253 + $0x10] sm:$0xf]
        %v259 = vld [vmem:[%s253 + $0x14] sm:$0xf]
        %v260 = vld [vmem:[%s253 + $0x18] sm:$0xf]
        %v261 = vld [vmem:[%s253 + $0x1c] sm:$0xf]
        %v262 = vld [vmem:[%s253 + $0x20] sm:$0xf]
        %v263 = vld [vmem:[%s253 + $0x24] sm:$0xf]
        %v264 = vld [vmem:[%s253 + $0x28] sm:$0xf]
        %v265 = vld [vmem:[%s253 + $0x2c] sm:$0xf]
        %v266 = vld [vmem:[%s253 + $0x30] sm:$0xf]
        %v267 = vld [vmem:[%s253 + $0x34] sm:$0xf]
        %v268 = vld [vmem:[%s253 + $0x38] sm:$0xf]
        %v269 = vld [vmem:[%s253 + $0x3c] sm:$0xf]
        %v270 = vld [vmem:[%s231] sm:$0xff]
        %v271 = vpack.c.bf16 %v270, %v270
        %v273 = vlaneseq
        %v274 = vshrl.u32 %v273, 7
        %v275 = vsub.s32 0, %v274
        %v276 = vrot.slane %v249, %v275
        %v282 = vunpack.c.l.b16 %v244
        %v283 = vunpack.c.l.b16 %v245
        %v284 = vunpack.c.l.b16 %v246
        %v285 = vunpack.c.l.b16 %v247
        %v286 = vpack.c.b16 %v283, %v282
        %v287 = vpack.c.b16 %v285, %v284
        %vm290 = vcmask 261120
        %v292 = vsel %vm290, %v271, 0
        %294 = vmatprep.subr.bf16.mxu0 0
        %295 = vmatpush1.bf16.msra.mxu0 0
        %296 = vmatprep.subr.bf16.mxu0 0
        %297 = vmatpush1.bf16.msra.mxu0 0
        %298 = vmatprep.subr.bf16.mxu0 0
        %299 = vmatpush1.bf16.msra.mxu0 0
        %300 = vmatprep.subr.bf16.mxu0 0
        %301 = vmatpush1.bf16.msra.mxu0 0
        %302 = vmatprep.subr.bf16.mxu0 0
        %303 = vmatpush1.bf16.msra.mxu0 0
        %304 = vmatprep.subr.bf16.mxu0 0
        %305 = vmatpush1.bf16.msra.mxu0 0
        %306 = vmatprep.subr.bf16.mxu0 0
        %307 = vmatpush1.bf16.msra.mxu0 %v287
        %308 = vmatprep.subr.bf16.mxu0 0
        %309 = vmatpush1.bf16.msra.mxu0 %v286
        %310 = vmatprep.subr.bf16.mxu0 0
        %311 = vmatpush2.bf16.msra.mxu0 0
        %312 = vmatprep.subr.bf16.mxu0 0
        %313 = vmatpush2.bf16.msra.mxu0 0
        %314 = vmatprep.subr.bf16.mxu0 0
        %315 = vmatpush2.bf16.msra.mxu0 0
        %316 = vmatprep.subr.bf16.mxu0 0
        %317 = vmatpush2.bf16.msra.mxu0 0
        %318 = vmatprep.subr.bf16.mxu0 0
        %319 = vmatpush2.bf16.msra.mxu0 0
        %320 = vmatprep.subr.bf16.mxu0 0
        %321 = vmatpush2.bf16.msra.mxu0 0
        %322 = vmatprep.subr.bf16.mxu0 0
        %323 = vmatpush2.bf16.msra.mxu0 0
        %324 = vmatprep.subr.bf16.mxu0 0
        %325 = vmatpush2.bf16.msra.mxu0 0
        %326 = vmatprep.mubr.bf16.mxu0 0
        %327 = vmatmul.mubr.bf16.gmra.mxu0 %v292
        %v328 = vpop.f32.mrf.mxu0
        %v329 = vadd.f32 %v276, %v328
        %v330 = vpop.f32.mrf.mxu0
        %v331 = vpop.f32.mrf.mxu0
        %v332 = vpop.f32.mrf.mxu0
        %333 = vdwg.mxu0
        %v334 = vmul.f32 %v329, 0.5
        %v335 = vmul.f32 %v329, 0.044715
        %v336 = vmul.f32 %v335, %v329
        %v337 = vmul.f32 %v336, %v329
        %v338 = vadd.f32 %v329, %v337
        %v339 = vmul.f32 %v338, 0.7978846
        %v340 = vtanh.pop %v339
        %v341 = vadd.f32 %v340, 1.0
        %v342 = vmul.f32 %v334, %v341
        %v343 = vld [vmem:[%s227] sm:$0xff]
        %v344 = vpack.c.bf16 %v342, %v342
        %v361 = vunpack.c.l.b16 %v254
        %v362 = vunpack.c.l.b16 %v255
        %v363 = vunpack.c.l.b16 %v256
        %v364 = vunpack.c.l.b16 %v257
        %v365 = vunpack.c.l.b16 %v258
        %v366 = vunpack.c.l.b16 %v259
        %v367 = vunpack.c.l.b16 %v260
        %v368 = vunpack.c.l.b16 %v261
        %v369 = vunpack.c.l.b16 %v262
        %v370 = vunpack.c.l.b16 %v263
        %v371 = vunpack.c.l.b16 %v264
        %v372 = vunpack.c.l.b16 %v265
        %v373 = vunpack.c.l.b16 %v266
        %v374 = vunpack.c.l.b16 %v267
        %v375 = vunpack.c.l.b16 %v268
        %v376 = vunpack.c.l.b16 %v269
        %v377 = vpack.c.b16 %v362, %v361
        %v378 = vpack.c.b16 %v364, %v363
        %v379 = vpack.c.b16 %v366, %v365
        %v380 = vpack.c.b16 %v368, %v367
        %v381 = vpack.c.b16 %v370, %v369
        %v382 = vpack.c.b16 %v372, %v371
        %v383 = vpack.c.b16 %v374, %v373
        %v384 = vpack.c.b16 %v376, %v375
        %393 = vmatprep.subr.bf16.mxu0 0
        %394 = vmatpush1.bf16.msra.mxu0 %v384
        %395 = vmatprep.subr.bf16.mxu0 0
        %396 = vmatpush1.bf16.msra.mxu0 %v383
        %397 = vmatprep.subr.bf16.mxu0 0
        %398 = vmatpush1.bf16.msra.mxu0 %v382
        %399 = vmatprep.subr.bf16.mxu0 0
        %400 = vmatpush1.bf16.msra.mxu0 %v381
        %401 = vmatprep.subr.bf16.mxu0 0
        %402 = vmatpush1.bf16.msra.mxu0 %v380
        %403 = vmatprep.subr.bf16.mxu0 0
        %404 = vmatpush1.bf16.msra.mxu0 %v379
        %405 = vmatprep.subr.bf16.mxu0 0
        %406 = vmatpush1.bf16.msra.mxu0 %v378
        %407 = vmatprep.subr.bf16.mxu0 0
        %408 = vmatpush1.bf16.msra.mxu0 %v377
        %409 = vmatprep.subr.bf16.mxu0 0
        %410 = vmatpush2.bf16.msra.mxu0 0
        %411 = vmatprep.subr.bf16.mxu0 0
        %412 = vmatpush2.bf16.msra.mxu0 0
        %413 = vmatprep.subr.bf16.mxu0 0
        %414 = vmatpush2.bf16.msra.mxu0 0
        %415 = vmatprep.subr.bf16.mxu0 0
        %416 = vmatpush2.bf16.msra.mxu0 0
        %417 = vmatprep.subr.bf16.mxu0 0
        %418 = vmatpush2.bf16.msra.mxu0 0
        %419 = vmatprep.subr.bf16.mxu0 0
        %420 = vmatpush2.bf16.msra.mxu0 0
        %421 = vmatprep.subr.bf16.mxu0 0
        %422 = vmatpush2.bf16.msra.mxu0 0
        %423 = vmatprep.subr.bf16.mxu0 0
        %424 = vmatpush2.bf16.msra.mxu0 0
        %425 = vmatprep.mubr.bf16.mxu0 0
        %426 = vmatmul.mubr.bf16.gmra.mxu0 %v344
        %v427 = vpop.f32.mrf.mxu0
        %v428 = vadd.f32 0.0, %v427
        %v429 = vpop.f32.mrf.mxu0
        %v430 = vpop.f32.mrf.mxu0
        %v431 = vpop.f32.mrf.mxu0
        %432 = vdwg.mxu0
        %v433 = vadd.f32 %v343, %v428
        %434 = vst.msk [vmem:[%s227] sm:$0xff] %vm290, %v433
        // Predicated region
        $region45: #{tpu_custom_call.1} parent=39 // pred_check
          %p435 = pneg %p233
        $region46: #{tpu_custom_call.1} parent=39 // pred_check_branch
          %437 = sbr.rel (%p435) target = $region48
        $region47: #{tpu_custom_call.1} parent=39 // pred_region
          %v438 = vld [vmem:[%s227] sm:$0xff]
          %v439 = vld [vmem:[%s4] sm:$0x1]
          %v441 = vlaneseq
          %v442 = vshrl.u32 %v441, 7
          %v443 = vsub.s32 0, %v442
          %v444 = vrot.slane %v439, %v443
          %v446 = vadd.f32 %v438, %v444
          %447 = vst.msk [vmem:[%s227] sm:$0xff] %vm290, %v446
        $region48: #{tpu_custom_call.1} parent=39 // pred_fallthru
          _
        %s448 = sand.u32 %s149, 1
        %s449 = scalar_lea.sflag [#allocation3], %s448
        %s450 = sand.u32 %s149, 1
        %s451 = smul.addr %s450, 8
        %s452 = scalar_lea.vmem [#allocation2], %s451
        // Predicated region
        $region49: #{tpu_custom_call.1} parent=39 // pred_check
          %p453 = pneg %p159
        $region50: #{tpu_custom_call.1} parent=39 // pred_check_branch
          %455 = sbr.rel (%p453) target = $region52
        $region51: #{tpu_custom_call.1} parent=39 // pred_region
          %s457 = ssub.s32 128, 128
          %458 = vsyncadd %s449, %s457
          %s459 = smul.addr %s23, 128
          %s460 = scalar_lea.hbm %s5, %s459
          %s462 = sshll.u32 %s452, 4
          %s463 = int_to_ptr.vmem [resolvable:$true] %s462
          %465 = dma.vmem_to_hbm [thread:$0]  %s463, 128, %s460, %s449
        $region52: #{tpu_custom_call.1} parent=39 // pred_fallthru
          _
      $region40: #{tpu_custom_call.1} parent=5 // pred_fallthru
        _
      %p466 = scmp.le.s32.totalorder 2, %s14
      // Predicated region
      $region53: #{tpu_custom_call.1} parent=5 // pred_check
        %p467 = pneg %p466
      $region54: #{tpu_custom_call.1} parent=5 // pred_check_branch
        %469 = sbr.rel (%p467) target = $region56
      $region55: #{tpu_custom_call.1} parent=5 // pred_region
        %s470 = ssub.s32 %s14, 2
        // Predicated region
        $region57: #{tpu_custom_call.1} parent=55 // pred_check
          %p471 = pneg %p165
        $region58: #{tpu_custom_call.1} parent=55 // pred_check_branch
          %473 = sbr.rel (%p471) target = $region60
        $region59: #{tpu_custom_call.1} parent=55 // pred_region
          %s474 = sand.u32 %s150, 1
          %s475 = scalar_lea.sflag [#allocation3], %s474
          %s476 = sand.u32 %s150, 1
          %s477 = smul.addr %s476, 8
          %s478 = scalar_lea.vmem [#allocation2], %s477
          %479 = dma.done %s475, 128
        $region60: #{tpu_custom_call.1} parent=55 // pred_fallthru
          _
      $region56: #{tpu_custom_call.1} parent=5 // pred_fallthru
        _
    $region6: #{tpu_custom_call.1} parent=1 // loop_footer
      %s18 = sadd.s32 1, %s14
    $region7: #{tpu_custom_call.1} parent=1 // loop_footer_branch
      %13 = sbr.rel target = $region3
    $region8: #{tpu_custom_call.1} parent=1 // loop_exit
      _
    %480 = vsyncpa [#allocation3], 1
    %s481 = scalar_lea.sflag [#allocation3], 1
    %482 = vsyncpa %s481, 1

</llo_original>
